<compile_context>
chip_gen: v5e
topology: v5e:2x2
jax: 0.10.0
libtpu: 0.0.40
codegen_flags: <defaults>
</compile_context>

<pallas_src>
import math
from functools import partial

import jax
import jax.numpy as jnp
from jax.experimental import pallas as pl
from jax.experimental.pallas import tpu as pltpu


# ~2 MiB per block per array side; x2 arrays x2 pipeline buffers ~= 8 MiB peak.
_BLOCK_BYTES_TARGET = 2 << 20


def _pad_last_kernel(x_ref, o_ref, *, dim_size, pad_amount):
    # Padded axis is the last (lane) axis: lane-dense copy + zero only the tail.
    o_ref[:, pl.ds(0, dim_size)] = x_ref[...]
    o_ref[:, pl.ds(dim_size, pad_amount)] = jnp.zeros(
        (o_ref.shape[0], pad_amount), dtype=o_ref.dtype)


def _pad_mid_kernel(x_ref, o_ref, *, dim_size, pad_amount):
    # Padded axis is the middle axis: copy input region, zero only the tail.
    o_ref[:, pl.ds(0, dim_size), :] = x_ref[...]
    o_ref[:, pl.ds(dim_size, pad_amount), :] = jnp.zeros(
        (o_ref.shape[0], pad_amount, o_ref.shape[2]), dtype=o_ref.dtype)


def pad_to_multiple(x, multiple: int, dim: int = 0):
    """Pads `x` with zeros along `dim` so its size becomes a multiple of `multiple`."""
    shape = x.shape
    d = shape[dim]
    next_d = (d + multiple - 1) // multiple * multiple
    pad_amount = next_d - d
    if pad_amount == 0:
        # No-op: skip the kernel entirely (saves 2x tensor HBM traffic + launch).
        return x

    pre = math.prod(shape[:dim]) if dim > 0 else 1
    post = math.prod(shape[dim + 1:]) if dim < len(shape) - 1 else 1
    itemsize = jnp.dtype(x.dtype).itemsize
    sublane = max(8, 32 // itemsize)  # 8 for f32, 16 for bf16, 32 for int8/fp8

    cost = pl.CostEstimate(
        flops=0,
        transcendentals=0,
        bytes_accessed=(pre * d * post + pre * next_d * post) * itemsize,
    )

    if post == 1:
        # ---- Lane-dense path: padded axis is the last axis -> 128 lanes. ----
        x2 = x.reshape(pre, d)
        row_bytes = next_d * itemsize
        if pre * row_bytes <= _BLOCK_BYTES_TARGET:
            tile_pre = pre  # full extent satisfies the sublane rule
        else:
            tile_pre = max(sublane,
                           (_BLOCK_BYTES_TARGET // row_bytes) // sublane * sublane)
            tile_pre = min(tile_pre, pre)

        out2 = pl.pallas_call(
            partial(_pad_last_kernel, dim_size=d, pad_amount=pad_amount),
            out_shape=jax.ShapeDtypeStruct((pre, next_d), x.dtype),
            grid=(pl.cdiv(pre, tile_pre),),
            in_specs=[pl.BlockSpec((tile_pre, d), lambda i: (i, 0))],
            out_specs=pl.BlockSpec((tile_pre, next_d), lambda i: (i, 0)),
            compiler_params=pltpu.CompilerParams(
                dimension_semantics=("parallel",)),
            cost_estimate=cost,
        )(x2)
        return out2.reshape(*shape[:dim], next_d, *shape[dim + 1:])

    # ---- General path: (pre, d, post), padded axis in the middle. ----
    # TODO(synk): when post < 128 the stores are masked (partial lanes); a
    # lane-dense repack would require a transpose whose cost outweighs the win.
    x3 = x.reshape(pre, d, post)

    plane_bytes = next_d * post * itemsize  # one `pre` slice of the output
    if plane_bytes <= _BLOCK_BYTES_TARGET:
        tile_post = post  # full extent -> (8,128) rule satisfied
    else:
        tile_post = max(128,
                        (_BLOCK_BYTES_TARGET // (next_d * itemsize)) // 128 * 128)
        tile_post = min(tile_post, post)

    block_bytes = next_d * tile_post * itemsize
    tile_pre = max(1, min(pre, _BLOCK_BYTES_TARGET // block_bytes))

    out3 = pl.pallas_call(
        partial(_pad_mid_kernel, dim_size=d, pad_amount=pad_amount),
        out_shape=jax.ShapeDtypeStruct((pre, next_d, post), x.dtype),
        grid=(pl.cdiv(pre, tile_pre), pl.cdiv(post, tile_post)),
        in_specs=[pl.BlockSpec((tile_pre, d, tile_post), lambda i, j: (i, 0, j))],
        out_specs=pl.BlockSpec((tile_pre, next_d, tile_post), lambda i, j: (i, 0, j)),
        compiler_params=pltpu.CompilerParams(
            dimension_semantics=("parallel", "parallel")),
        cost_estimate=cost,
    )(x3)
    return out3.reshape(*shape[:dim], next_d, *shape[dim + 1:])


def _reference(x, multiple, dim):
    d = x.shape[dim]
    next_d = (d + multiple - 1) // multiple * multiple
    pad_widths = [(0, 0)] * x.ndim
    pad_widths[dim] = (0, next_d - d)
    return jnp.pad(x, pad_widths)


if __name__ == "__main__":
    key = jax.random.PRNGKey(0)
    # Same shape as the original example script: x = torch.randn((6, 7, 8))
    x = jax.random.normal(key, (6, 7, 8), dtype=jnp.float32)

    # Case 1: pad middle axis 7 -> 8 (multiple=4): general 3D path.
    y = jax.block_until_ready(pad_to_multiple(x, multiple=4, dim=1))
    assert y.shape == (6, 8, 8), y.shape
    assert jnp.allclose(y, _reference(x, 4, 1)), "mismatch vs reference (dim=1)"

    # Case 2: pad leading axis 6 -> 8 (multiple=4): general 3D path, pre == 1.
    y0 = jax.block_until_ready(pad_to_multiple(x, multiple=4, dim=0))
    assert y0.shape == (8, 7, 8), y0.shape
    assert jnp.allclose(y0, _reference(x, 4, 0)), "mismatch vs reference (dim=0)"

    # Case 3: pad last axis 8 -> 10 (multiple=5): lane-dense 2D path.
    y2 = jax.block_until_ready(pad_to_multiple(x, multiple=5, dim=2))
    assert y2.shape == (6, 7, 10), y2.shape
    assert jnp.allclose(y2, _reference(x, 5, 2)), "mismatch vs reference (dim=2, pad)"

    # Case 4: no-op padding (8 already a multiple of 4) -> early return, no kernel.
    y3 = jax.block_until_ready(pad_to_multiple(x, multiple=4, dim=2))
    assert y3.shape == (6, 7, 8), y3.shape
    assert jnp.allclose(y3, x), "mismatch vs reference (dim=2, no-op)"

    print("KERNEL_OK")
</pallas_src>

<mosaic_0001>
module attributes {stable_mosaic.version = 11 : i64} {
  func.func @_pad_mid_kernel(%arg0: i32, %arg1: i32, %arg2: memref<6x7x8xf32, #tpu.memory_space<vmem>>, %arg3: memref<6x8x8xf32, #tpu.memory_space<vmem>>) attributes {dimension_semantics = [#tpu.dimension_semantics<parallel>, #tpu.dimension_semantics<parallel>], iteration_bounds = array<i64: 1, 1>, scalar_prefetch = 0 : i64, scratch_operands = 0 : i64, tpu.core_type = #tpu.core_type<tc>, window_params = [{transform_indices = @transform_0, window_bounds = array<i64: 6, 7, 8>}, {transform_indices = @transform_1, window_bounds = array<i64: 6, 8, 8>}]} {
    %c0 = arith.constant 0 : index
    %c0_0 = arith.constant 0 : index
    %c0_1 = arith.constant 0 : index
    %0 = vector.load %arg2[%c0, %c0_0, %c0_1] : memref<6x7x8xf32, #tpu.memory_space<vmem>>, vector<6x7x8xf32>
    %c0_2 = arith.constant 0 : index
    %c0_3 = arith.constant 0 : index
    %c0_4 = arith.constant 0 : index
    %1 = vector.load %arg3[%c0_2, %c0_3, %c0_4] : memref<6x8x8xf32, #tpu.memory_space<vmem>>, vector<6x7x8xf32>
    tpu.vector_store %arg3[%c0_2, %c0_3, %c0_4], %0 {strides = array<i32>} : memref<6x8x8xf32, #tpu.memory_space<vmem>>, vector<6x7x8xf32>,
    %cst = arith.constant 0.000000e+00 : f32
    %2 = vector.broadcast %cst : f32 to vector<6x1x8xf32>
    %c0_5 = arith.constant 0 : index
    %c7 = arith.constant 7 : index
    %c0_6 = arith.constant 0 : index
    %3 = vector.load %arg3[%c0_5, %c7, %c0_6] : memref<6x8x8xf32, #tpu.memory_space<vmem>>, vector<6x1x8xf32>
    tpu.vector_store %arg3[%c0_5, %c7, %c0_6], %2 {strides = array<i32>} : memref<6x8x8xf32, #tpu.memory_space<vmem>>, vector<6x1x8xf32>,
    return
  }
  func.func @transform_0(%arg0: i32, %arg1: i32) -> (i32, i32, i32) {
    %c0_i32 = arith.constant 0 : i32
    %c0_i32_0 = arith.constant 0 : i32
    return %arg0, %c0_i32, %arg1 : i32, i32, i32
  }
  func.func @transform_1(%arg0: i32, %arg1: i32) -> (i32, i32, i32) {
    %c0_i32 = arith.constant 0 : i32
    %c0_i32_0 = arith.constant 0 : i32
    return %arg0, %c0_i32, %arg1 : i32, i32, i32
  }
}

</mosaic_0001>

<llo_original>
// kernel: tpu_custom_call.1
$region0: #{tpu_custom_call.1}
  #allocation0 [shape = 'u32[]', space=smem, size = 0x4, offset = 0x4, fixed_abs, tag = 'smem constant byte address 0x4 - core index']
  #allocation1 [shape = 'u32[72,128]{1,0:T(1,128)}', space=vmem, size = 0x9000, scoped, tag = 'internal scratch']
  %s0 = inlined_call_operand.hbm [shape: f32[6,7,8], index: 0, kind: input, shape index: {}]
  %s1 = inlined_call_operand.hbm [shape: f32[6,8,8], index: 1, kind: output, shape index: {}]
  %s2 = sld [smem:[#allocation0]]
  $region18: #{tpu_custom_call.1} parent=0
    _
  %s4 = ssub.s32 1, %s2
  %s5 = scalar_select 0, %s4, %s2
  $region1: #{tpu_custom_call.1} parent=0
    #allocation2 [shape = 'u8[24576]{0}', space=vmem, size = 0x6000, scoped, tag = 'input window, operand 0, single buffered']
    #allocation3 [shape = 's32[1]{0}', space=sflag, size = 0x4, scoped, tag = 'scoped memory for tpu_custom_call.1']
    #allocation4 [shape = 's32[1]{0}', space=sflag, size = 0x4, scoped, tag = 'scoped memory for tpu_custom_call.1']
    #allocation5 [shape = 'u8[24576]{0}', space=vmem, size = 0x6000, scoped, tag = 'output window, operand 0, single buffered']
    %6 = vsyncpa [#allocation3], 0
    %7 = vsyncpa [#allocation4], 0
    // Predicated region
    $region2: #{tpu_custom_call.1} parent=1 // pred_check
      _
    $region3: #{tpu_custom_call.1} parent=1 // pred_check_branch
      %9 = sbr.rel (0) target = $region5
    $region4: #{tpu_custom_call.1} parent=1 // pred_region
      %11 = vsyncadd [#allocation3], 0
      %s12 = sshll.u32 %s0, 4
      %s13 = int_to_ptr.hbm [resolvable:$true] %s12
      %s14 = sshll.u32 [#allocation2], 4
      %s15 = int_to_ptr.vmem [resolvable:$true] %s14
      %20 = dma.hbm_to_vmem [thread:$0]  %s13, 768, %s15, [#allocation3], 128, 128, 8
    $region5: #{tpu_custom_call.1} parent=1 // pred_fallthru
      _
    // Predicated region
    $region6: #{tpu_custom_call.1} parent=1 // pred_check
      _
    $region7: #{tpu_custom_call.1} parent=1 // pred_check_branch
      %22 = sbr.rel (0) target = $region9
    $region8: #{tpu_custom_call.1} parent=1 // pred_region
      %24 = dma.done [#allocation3], 768
    $region9: #{tpu_custom_call.1} parent=1 // pred_fallthru
      _
    %v25 = vld [vmem:[#allocation2] sm:$0x7f]
    %v26 = vld [vmem:[#allocation2 + $0x8] sm:$0x7f]
    %v27 = vld [vmem:[#allocation2 + $0x10] sm:$0x7f]
    %v28 = vld [vmem:[#allocation2 + $0x18] sm:$0x7f]
    %v29 = vld [vmem:[#allocation2 + $0x20] sm:$0x7f]
    %v30 = vld [vmem:[#allocation2 + $0x28] sm:$0x7f]
    %vm31 = vcmask 63488
    %32 = vst.msk [vmem:[#allocation5] sm:$0x7f] %vm31, %v25
    %33 = vst.msk [vmem:[#allocation5 + $0x8] sm:$0x7f] %vm31, %v26
    %34 = vst.msk [vmem:[#allocation5 + $0x10] sm:$0x7f] %vm31, %v27
    %35 = vst.msk [vmem:[#allocation5 + $0x18] sm:$0x7f] %vm31, %v28
    %36 = vst.msk [vmem:[#allocation5 + $0x20] sm:$0x7f] %vm31, %v29
    %37 = vst.msk [vmem:[#allocation5 + $0x28] sm:$0x7f] %vm31, %v30
    %vm38 = vcmask 57344
    %39 = vst.msk [vmem:[#allocation5 + $0x7] sm:$0x1] %vm38, 0.0
    %40 = vst.msk [vmem:[#allocation5 + $0xf] sm:$0x1] %vm38, 0.0
    %41 = vst.msk [vmem:[#allocation5 + $0x17] sm:$0x1] %vm38, 0.0
    %42 = vst.msk [vmem:[#allocation5 + $0x1f] sm:$0x1] %vm38, 0.0
    %43 = vst.msk [vmem:[#allocation5 + $0x27] sm:$0x1] %vm38, 0.0
    %44 = vst.msk [vmem:[#allocation5 + $0x2f] sm:$0x1] %vm38, 0.0
    // Predicated region
    $region10: #{tpu_custom_call.1} parent=1 // pred_check
      _
    $region11: #{tpu_custom_call.1} parent=1 // pred_check_branch
      %46 = sbr.rel (0) target = $region13
    $region12: #{tpu_custom_call.1} parent=1 // pred_region
      %48 = vsyncadd [#allocation4], 0
      %s49 = sshll.u32 [#allocation5], 4
      %s50 = int_to_ptr.vmem [resolvable:$true] %s49
      %s51 = sshll.u32 %s1, 4
      %s52 = int_to_ptr.hbm [resolvable:$true] %s51
      %57 = dma.vmem_to_hbm [thread:$0]  %s50, 768, %s52, [#allocation4], 128, 128, 8
    $region13: #{tpu_custom_call.1} parent=1 // pred_fallthru
      _
    // Predicated region
    $region14: #{tpu_custom_call.1} parent=1 // pred_check
      _
    $region15: #{tpu_custom_call.1} parent=1 // pred_check_branch
      %59 = sbr.rel (0) target = $region17
    $region16: #{tpu_custom_call.1} parent=1 // pred_region
      %61 = dma.done [#allocation4], 768
    $region17: #{tpu_custom_call.1} parent=1 // pred_fallthru
      _
    %62 = vsyncpa [#allocation3], 1
    %63 = vsyncpa [#allocation4], 1

</llo_original>
